<compile_context>
chip_gen: v7x
topology: tpu7x:2x2x1
jax: 0.10.0
libtpu: 0.0.40
codegen_flags: <defaults>
</compile_context>

<pallas_src>
import functools
import math
from dataclasses import dataclass

import jax
import jax.numpy as jnp
from jax import lax
from jax.experimental import pallas as pl
from jax.experimental.pallas import tpu as pltpu

_LANE = 128
_SUBLANE = 8


def _round_up(n, m):
    return ((n + m - 1) // m) * m


# ---------------------------------------------------------------------------
# Parameter packing: done ONCE, outside the per-call forward path.
# ---------------------------------------------------------------------------
@dataclass(frozen=True)
class PackedRNN:
    wx: jax.Array        # (I, N_f)   bf16  -- input rows of fused [i2h | i2o]
    wh: jax.Array        # (K_h, N_f) bf16  -- hidden rows, zero-padded to K_h
    b: jax.Array         # (1, N_f)   f32   -- fused bias
    input_size: int
    hidden_size: int
    output_size: int
    off: int             # lane offset of the i2o (logits) columns
    n_f: int             # fused lane width (128 when O <= 64)
    k_h: int             # padded hidden width used for the recurrent dot


def pack_params(w_h, b_h, w_o, b_o, input_size, hidden_size):
    """w_h / w_o: (input_size + hidden_size, output_size) = nn.Linear weight.T."""
    I, H = input_size, hidden_size
    C, O = w_h.shape
    assert C == I + H and w_o.shape == (C, O)

    off = 64 if O <= 64 else _round_up(O, _LANE)
    n_f = 2 * off
    k_h = max(_LANE, _round_up(H, _LANE))

    w_fused = jnp.zeros((C, n_f), jnp.float32)
    w_fused = w_fused.at[:, :O].set(w_h).at[:, off:off + O].set(w_o)
    wx = w_fused[:I].astype(jnp.bfloat16)                       # (I, N_f)
    wh = (jnp.zeros((k_h, n_f), jnp.float32)
          .at[:H].set(w_fused[I:]).astype(jnp.bfloat16))        # (K_h, N_f)
    b = jnp.zeros((1, n_f), jnp.float32)
    b = b.at[0, :O].set(b_h).at[0, off:off + O].set(b_o)
    return PackedRNN(wx=wx, wh=wh, b=b, input_size=I, hidden_size=H,
                     output_size=O, off=off, n_f=n_f, k_h=k_h)


# ---------------------------------------------------------------------------
# Kernels
# ---------------------------------------------------------------------------
def _proj_kernel(x_ref, w_ref, b_ref, o_ref):
    """Bulk non-recurrent projection: o = x @ Wx + b (f32 accumulate)."""
    o_ref[...] = jnp.dot(x_ref[...], w_ref[...],
                         preferred_element_type=jnp.float32) + b_ref[...]


def _rnn_step_kernel(xproj_ref, h0_ref, wh_ref, out_ref, h_scr, *, o_valid, off):
    """One recurrent step: fused = xproj[t] + h @ Wh; log-softmax on the logit
    lanes; hidden + log-probs stored in a single lane-dense block."""
    t = pl.program_id(0)

    @pl.when(t == 0)
    def _():
        h_scr[...] = h0_ref[...]

    fused = xproj_ref[...] + jnp.dot(h_scr[...], wh_ref[...],
                                     preferred_element_type=jnp.float32)

    col = lax.broadcasted_iota(jnp.int32, fused.shape, 1)
    is_logit = (col >= off) & (col < off + o_valid)
    is_hidden = col < o_valid

    logits = jnp.where(is_logit, fused, jnp.float32(-jnp.inf))
    m = jnp.max(logits, axis=1, keepdims=True)
    shifted = logits - m
    lse = jnp.log(jnp.sum(jnp.exp(shifted), axis=1, keepdims=True))
    log_probs = shifted - lse

    # One unmasked (lane-dense) store: hidden in lanes [0:O], log-probs in
    # lanes [off:off+O], zeros elsewhere (no -inf ever reaches HBM).
    out_ref[...] = jnp.where(is_logit, log_probs,
                             jnp.where(is_hidden, fused, 0.0))

    # Feed the new hidden (= i2h output) back for the next step (bf16 carry).
    k_h = h_scr.shape[1]
    if k_h <= fused.shape[1]:
        h_scr[...] = jnp.where(col[:, :k_h] < o_valid,
                               fused[:, :k_h], 0.0).astype(h_scr.dtype)
    # else: hidden wider than the fused block can only happen when the hidden
    # is never fed back (single step with H != O) -> dead write skipped.


# ---------------------------------------------------------------------------
# Forward wrappers
# ---------------------------------------------------------------------------
def rnn_forward_sequence(xs, h0, params: PackedRNN):
    """Applies the RNN cell over a sequence; the time loop runs inside the
    recurrent kernel with resident weights and a VMEM hidden scratch.

    xs: (T, B, input_size) f32, h0: (B, hidden_size) f32.
    Returns (log_probs (T, B, O), hiddens (T, B, O)).
    """
    T, B, I = xs.shape
    H, O = params.hidden_size, params.output_size
    assert I == params.input_size and h0.shape == (B, H)
    if T > 1:
        assert O == H, "feeding hidden back requires output_size == hidden_size"

    off, n_f, k_h = params.off, params.n_f, params.k_h
    B_pad = _round_up(B, _SUBLANE)

    # ---- Phase 1: bulk input projection, M = T_pad * B_pad rows ------------
    t_chunk = min(T, max(1, 256 // B_pad))
    T_pad = _round_up(T, t_chunk)
    tile_m = t_chunk * B_pad

    x_all = jnp.zeros((T_pad, B_pad, I), jnp.bfloat16)
    x_all = x_all.at[:T, :B].set(xs.astype(jnp.bfloat16))
    x_all = x_all.reshape(T_pad * B_pad, I)

    xproj = pl.pallas_call(
        _proj_kernel,
        grid=(T_pad // t_chunk,),
        in_specs=[
            pl.BlockSpec((tile_m, I), lambda i: (i, 0)),
            pl.BlockSpec((I, n_f), lambda i: (0, 0)),
            pl.BlockSpec((1, n_f), lambda i: (0, 0)),
        ],
        out_specs=pl.BlockSpec((tile_m, n_f), lambda i: (i, 0)),
        out_shape=jax.ShapeDtypeStruct((T_pad * B_pad, n_f), jnp.float32),
        compiler_params=pltpu.CompilerParams(
            dimension_semantics=("parallel",)),
    )(x_all, params.wx, params.b)
    xproj = xproj.reshape(T_pad, B_pad, n_f)

    # ---- Phase 2: serial recurrence, weights + hidden resident in VMEM -----
    h0_p = jnp.zeros((B_pad, k_h), jnp.bfloat16)
    h0_p = h0_p.at[:B, :H].set(h0.astype(jnp.bfloat16))

    flops = 2 * T * B_pad * k_h * n_f + 8 * T * B_pad * n_f
    bytes_acc = ((T_pad + T) * B_pad * n_f * 4
                 + (k_h * n_f + B_pad * k_h) * 2)
    kernel = functools.partial(_rnn_step_kernel, o_valid=O, off=off)

    out = pl.pallas_call(
        kernel,
        grid=(T,),
        in_specs=[
            pl.BlockSpec((None, B_pad, n_f), lambda t: (t, 0, 0)),   # xproj[t]
            pl.BlockSpec((B_pad, k_h), lambda t: (0, 0)),            # h0 (resident)
            pl.BlockSpec((k_h, n_f), lambda t: (0, 0)),              # Wh (resident)
        ],
        out_specs=pl.BlockSpec((None, B_pad, n_f), lambda t: (t, 0, 0)),
        out_shape=jax.ShapeDtypeStruct((T, B_pad, n_f), jnp.float32),
        scratch_shapes=[pltpu.VMEM((B_pad, k_h), jnp.bfloat16)],     # hidden carry
        compiler_params=pltpu.CompilerParams(
            dimension_semantics=("arbitrary",)),
        cost_estimate=pl.CostEstimate(flops=flops,
                                      transcendentals=T * B_pad * n_f,
                                      bytes_accessed=bytes_acc),
    )(xproj, h0_p, params.wh)

    out = out[:, :B, :]
    hiddens = out[..., :O]
    log_probs = out[..., off:off + O]
    return log_probs, hiddens


def rnn_forward(x, hidden, params: PackedRNN):
    """Single step, exactly RNN.forward(input, hidden) -> (output, hidden)."""
    log_probs, hiddens = rnn_forward_sequence(x[None], hidden, params)
    return log_probs[0], hiddens[0]


# ---------------------------------------------------------------------------
# Demo / self-test
# ---------------------------------------------------------------------------
def init_linear_params(key, in_features, out_features):
    """nn.Linear-style uniform(-1/sqrt(fan_in), 1/sqrt(fan_in)) init."""
    kw, kb = jax.random.split(key)
    bound = 1.0 / math.sqrt(in_features)
    w = jax.random.uniform(kw, (in_features, out_features), jnp.float32, -bound, bound)
    b = jax.random.uniform(kb, (out_features,), jnp.float32, -bound, bound)
    return w, b


if __name__ == "__main__":
    batch = 2
    input_size = 16
    hidden_size = 32
    output_size = 32      # == hidden_size so the hidden can be fed back
    seq_len = 8

    key = jax.random.PRNGKey(0)
    k_x, k_i2h, k_i2o = jax.random.split(key, 3)

    xs = jax.random.normal(k_x, (seq_len, batch, input_size), jnp.float32)
    h0 = jnp.zeros((batch, hidden_size), jnp.float32)     # initHidden(), batched

    w_h, b_h = init_linear_params(k_i2h, input_size + hidden_size, output_size)
    w_o, b_o = init_linear_params(k_i2o, input_size + hidden_size, output_size)
    params = pack_params(w_h, b_h, w_o, b_o, input_size, hidden_size)

    # Single step (exact module semantics) + full sequence (loop in kernel).
    out0, hid0 = rnn_forward(xs[0], h0, params)
    outs, hids = rnn_forward_sequence(xs, h0, params)
    out0, hid0, outs, hids = jax.block_until_ready((out0, hid0, outs, hids))

    # Reference: plain JAX step loop with the same bf16-rounded MXU operands
    # and bf16 hidden carry that the kernel uses.
    whb = w_h.astype(jnp.bfloat16).astype(jnp.float32)
    wob = w_o.astype(jnp.bfloat16).astype(jnp.float32)
    h = h0
    ref_outs, ref_hids = [], []
    for t in range(seq_len):
        xb = xs[t].astype(jnp.bfloat16).astype(jnp.float32)
        hb = h.astype(jnp.bfloat16).astype(jnp.float32)
        comb = jnp.concatenate([xb, hb], axis=1)
        hid = comb @ whb + b_h
        logit = comb @ wob + b_o
        ref_outs.append(jax.nn.log_softmax(logit, axis=1))
        ref_hids.append(hid)
        h = hid
    ref_outs = jnp.stack(ref_outs)
    ref_hids = jnp.stack(ref_hids)

    assert outs.shape == (seq_len, batch, output_size)
    assert hids.shape == (seq_len, batch, output_size)
    assert jnp.allclose(out0, ref_outs[0], atol=2e-3), "single-step output mismatch"
    assert jnp.allclose(hid0, ref_hids[0], atol=2e-3), "single-step hidden mismatch"
    assert jnp.allclose(outs, ref_outs, atol=2e-2), "sequence output mismatch"
    assert jnp.allclose(hids, ref_hids, atol=2e-2), "sequence hidden mismatch"

    print("KERNEL_OK")
</pallas_src>

<mosaic_0001>
module attributes {stable_mosaic.version = 11 : i64} {
  func.func @_proj_kernel(%arg0: i32, %arg1: memref<8x16xbf16, #tpu.memory_space<vmem>>, %arg2: memref<16x128xbf16, #tpu.memory_space<vmem>>, %arg3: memref<1x128xf32, #tpu.memory_space<vmem>>, %arg4: memref<8x128xf32, #tpu.memory_space<vmem>>) attributes {dimension_semantics = [#tpu.dimension_semantics<parallel>], iteration_bounds = array<i64: 1>, scalar_prefetch = 0 : i64, scratch_operands = 0 : i64, tpu.core_type = #tpu.core_type<tc>, window_params = [{transform_indices = @transform_0, window_bounds = array<i64: 8, 16>}, {pipeline_mode = #tpu.pipeline_mode<synchronous>, transform_indices = @transform_1, window_bounds = array<i64: 16, 128>}, {pipeline_mode = #tpu.pipeline_mode<synchronous>, transform_indices = @transform_2, window_bounds = array<i64: 1, 128>}, {transform_indices = @transform_3, window_bounds = array<i64: 8, 128>}]} {
    %c0 = arith.constant 0 : index
    %c0_0 = arith.constant 0 : index
    %0 = vector.load %arg1[%c0, %c0_0] : memref<8x16xbf16, #tpu.memory_space<vmem>>, vector<8x16xbf16>
    %c0_1 = arith.constant 0 : index
    %c0_2 = arith.constant 0 : index
    %1 = vector.load %arg2[%c0_1, %c0_2] : memref<16x128xbf16, #tpu.memory_space<vmem>>, vector<16x128xbf16>
    %cst = arith.constant dense<0.000000e+00> : vector<8x128xf32>
    %2 = tpu.matmul %0, %1, %cst {dimension_numbers = #tpu.dot_dimension_numbers<[1], [0], [0], [1], [0, 0, 1, 1], [], []>} : vector<8x16xbf16>, vector<16x128xbf16>, vector<8x128xf32> -> vector<8x128xf32>
    %c0_3 = arith.constant 0 : index
    %c0_4 = arith.constant 0 : index
    %3 = vector.load %arg3[%c0_3, %c0_4] : memref<1x128xf32, #tpu.memory_space<vmem>>, vector<1x128xf32>
    %4 = vector.broadcast %3 : vector<1x128xf32> to vector<8x128xf32>
    %5 = arith.addf %2, %4 : vector<8x128xf32>
    %c0_5 = arith.constant 0 : index
    %c0_6 = arith.constant 0 : index
    %6 = vector.load %arg4[%c0_5, %c0_6] : memref<8x128xf32, #tpu.memory_space<vmem>>, vector<8x128xf32>
    tpu.vector_store %arg4[%c0_5, %c0_6], %5 {strides = array<i32>} : memref<8x128xf32, #tpu.memory_space<vmem>>, vector<8x128xf32>,
    return
  }
  func.func @transform_0(%arg0: i32) -> (i32, i32) {
    %c0_i32 = arith.constant 0 : i32
    %c0_i32_0 = arith.constant 0 : i32
    return %arg0, %c0_i32 : i32, i32
  }
  func.func @transform_1(%arg0: i32) -> (i32, i32) {
    %c0_i32 = arith.constant 0 : i32
    %c0_i32_0 = arith.constant 0 : i32
    %c0_i32_1 = arith.constant 0 : i32
    return %c0_i32, %c0_i32_0 : i32, i32
  }
  func.func @transform_2(%arg0: i32) -> (i32, i32) {
    %c0_i32 = arith.constant 0 : i32
    %c0_i32_0 = arith.constant 0 : i32
    %c0_i32_1 = arith.constant 0 : i32
    return %c0_i32, %c0_i32_0 : i32, i32
  }
  func.func @transform_3(%arg0: i32) -> (i32, i32) {
    %c0_i32 = arith.constant 0 : i32
    %c0_i32_0 = arith.constant 0 : i32
    return %arg0, %c0_i32 : i32, i32
  }
}

</mosaic_0001>

<llo_original>
// kernel: tpu_custom_call.1
$region0: #{tpu_custom_call.1}
  #allocation0 [shape = 'u32[]', space=smem, size = 0x4, offset = 0x4, fixed_abs, tag = 'smem constant byte address 0x4 - core index']
  #allocation1 [shape = 'u32[144,128]{1,0:T(1,128)}', space=vmem, size = 0x12000, scoped, tag = 'internal scratch']
  %s0 = inlined_call_operand.hbm [shape: bf16[8,16], index: 0, kind: input, shape index: {}]
  %s1 = inlined_call_operand.hbm [shape: bf16[16,128], index: 1, kind: input, shape index: {}]
  %s2 = inlined_call_operand.vmem [shape: f32[1,128], index: 2, kind: input, shape index: {}]
  %s3 = inlined_call_operand.hbm [shape: f32[8,128], index: 3, kind: output, shape index: {}]
  %s4 = sld [smem:[#allocation0]]
  $region30: #{tpu_custom_call.1} parent=0
    _
  %s6 = ssub.s32 1, %s4
  %s7 = scalar_select 0, %s6, %s4
  $region1: #{tpu_custom_call.1} parent=0
    #allocation2 [shape = 'u8[2048]{0}', space=vmem, size = 0x800, scoped, tag = 'input window, operand 0, single buffered']
    #allocation3 [shape = 's32[1]{0}', space=sflag, size = 0x4, scoped, tag = 'scoped memory for tpu_custom_call.1']
    #allocation4 [shape = 's32[1]{0}', space=sflag, size = 0x4, scoped, tag = 'scoped memory for tpu_custom_call.1']
    #allocation5 [shape = 'u8[4096]{0}', space=vmem, size = 0x1000, scoped, tag = 'input window, operand 1, single buffered']
    #allocation6 [shape = 's32[1]{0}', space=sflag, size = 0x4, scoped, tag = 'scoped memory for tpu_custom_call.1']
    #allocation7 [shape = 'u8[4096]{0}', space=vmem, size = 0x1000, scoped, tag = 'output window, operand 0, single buffered']
    %8 = vsyncpa [#allocation3], 0
    %9 = vsyncpa [#allocation6], 0
    %10 = vsyncpa [#allocation4], 0
    // Predicated region
    $region2: #{tpu_custom_call.1} parent=1 // pred_check
      _
    $region3: #{tpu_custom_call.1} parent=1 // pred_check_branch
      %12 = sbr.rel (0) target = $region5
    $region4: #{tpu_custom_call.1} parent=1 // pred_region
      %s14 = ssub.s32 64, 64
      %15 = vsyncadd [#allocation3], %s14
      %s17 = sshll.u32 [#allocation2], 4
      %s18 = int_to_ptr.vmem [resolvable:$true] %s17
      %20 = dma.hbm_to_vmem [thread:$0]  %s0, 64, %s18, [#allocation3]
    $region5: #{tpu_custom_call.1} parent=1 // pred_fallthru
      _
    // Predicated region
    $region6: #{tpu_custom_call.1} parent=1 // pred_check
      _
    $region7: #{tpu_custom_call.1} parent=1 // pred_check_branch
      %22 = sbr.rel (0) target = $region9
    $region8: #{tpu_custom_call.1} parent=1 // pred_region
      %s24 = ssub.s32 128, 128
      %25 = vsyncadd [#allocation6], %s24
      %s26 = sshll.u32 [#allocation5], 4
      %s27 = int_to_ptr.vmem [resolvable:$true] %s26
      %32 = dma.hbm_to_vmem [thread:$0]  %s1, 128, %s27, [#allocation6], 64, 64, 4
    $region9: #{tpu_custom_call.1} parent=1 // pred_fallthru
      _
    // Predicated region
    $region10: #{tpu_custom_call.1} parent=1 // pred_check
      _
    $region11: #{tpu_custom_call.1} parent=1 // pred_check_branch
      %34 = sbr.rel (0) target = $region13
    $region12: #{tpu_custom_call.1} parent=1 // pred_region
      _
    $region13: #{tpu_custom_call.1} parent=1 // pred_fallthru
      _
    // Predicated region
    $region14: #{tpu_custom_call.1} parent=1 // pred_check
      _
    $region15: #{tpu_custom_call.1} parent=1 // pred_check_branch
      %36 = sbr.rel (0) target = $region17
    $region16: #{tpu_custom_call.1} parent=1 // pred_region
      %37 = dma.done [#allocation3], 64
    $region17: #{tpu_custom_call.1} parent=1 // pred_fallthru
      _
    // Predicated region
    $region18: #{tpu_custom_call.1} parent=1 // pred_check
      _
    $region19: #{tpu_custom_call.1} parent=1 // pred_check_branch
      %39 = sbr.rel (0) target = $region21
    $region20: #{tpu_custom_call.1} parent=1 // pred_region
      %40 = dma.done [#allocation6], 128
    $region21: #{tpu_custom_call.1} parent=1 // pred_fallthru
      _
    %v42 = vld [vmem:[#allocation2] sm:$0xf]
    %v43 = vld [vmem:[#allocation5] sm:$0xf]
    %v44 = vld [vmem:[#allocation5 + $0x4] sm:$0xf]
    %v45 = vld [vmem:[%s2] sm:$0x1]
    %v47 = vlaneseq
    %v48 = vshrl.u32 %v47, 7
    %v49 = vsub.s32 0, %v48
    %v50 = vrot.slane %v45, %v49
    %v54 = vunpack.c.l.b16 %v43
    %v55 = vunpack.c.l.b16 %v44
    %v56 = vpack.c.b16 %v55, %v54
    %vm58 = vcmask 130048
    %v60 = vsel %vm58, %v42, 0
    %62 = vmatprep.subr.bf16.mxu0 0
    %63 = vmatpush1.bf16.msra.mxu0 %v56
    %64 = vmatprep.subr.bf16.mxu0 0
    %65 = vmatpush1.bf16.msra.mxu0 0
    %66 = vmatprep.subr.bf16.mxu0 0
    %67 = vmatpush1.bf16.msra.mxu0 0
    %68 = vmatprep.subr.bf16.mxu0 0
    %69 = vmatpush1.bf16.msra.mxu0 0
    %70 = vmatprep.subr.bf16.mxu0 0
    %71 = vmatpush1.bf16.msra.mxu0 0
    %72 = vmatprep.subr.bf16.mxu0 0
    %73 = vmatpush1.bf16.msra.mxu0 0
    %74 = vmatprep.subr.bf16.mxu0 0
    %75 = vmatpush1.bf16.msra.mxu0 0
    %76 = vmatprep.subr.bf16.mxu0 0
    %77 = vmatpush1.bf16.msra.mxu0 0
    %78 = vmatprep.subr.bf16.mxu0 0
    %79 = vmatpush1.bf16.msra.mxu0 0
    %80 = vmatprep.subr.bf16.mxu0 0
    %81 = vmatpush1.bf16.msra.mxu0 0
    %82 = vmatprep.subr.bf16.mxu0 0
    %83 = vmatpush1.bf16.msra.mxu0 0
    %84 = vmatprep.subr.bf16.mxu0 0
    %85 = vmatpush1.bf16.msra.mxu0 0
    %86 = vmatprep.subr.bf16.mxu0 0
    %87 = vmatpush1.bf16.msra.mxu0 0
    %88 = vmatprep.subr.bf16.mxu0 0
    %89 = vmatpush1.bf16.msra.mxu0 0
    %90 = vmatprep.subr.bf16.mxu0 0
    %91 = vmatpush1.bf16.msra.mxu0 0
    %92 = vmatprep.subr.bf16.mxu0 0
    %93 = vmatpush1.bf16.msra.mxu0 0
    %94 = vmatprep.mubr.bf16.mxu0 0
    %95 = vmatmul.mubr.bf16.gmra.mrb[0].mxu0 %v60
    %v96 = vpop.f32.mrb[0].mxu0
    %v97 = vadd.f32 %v50, %v96
    %v98 = vpop.f32.mrb[0].mxu0
    %v99 = vpop.f32.mrb[0].mxu0
    %v100 = vpop.f32.mrb[0].mxu0
    %101 = vdwg.mxu0
    %102 = vst [vmem:[#allocation7] sm:$0xff] %v97
    // Predicated region
    $region22: #{tpu_custom_call.1} parent=1 // pred_check
      _
    $region23: #{tpu_custom_call.1} parent=1 // pred_check_branch
      %104 = sbr.rel (0) target = $region25
    $region24: #{tpu_custom_call.1} parent=1 // pred_region
      %s106 = ssub.s32 128, 128
      %107 = vsyncadd [#allocation4], %s106
      %s109 = sshll.u32 [#allocation7], 4
      %s110 = int_to_ptr.vmem [resolvable:$true] %s109
      %112 = dma.vmem_to_hbm [thread:$0]  %s110, 128, %s3, [#allocation4]
    $region25: #{tpu_custom_call.1} parent=1 // pred_fallthru
      _
    // Predicated region
    $region26: #{tpu_custom_call.1} parent=1 // pred_check
      _
    $region27: #{tpu_custom_call.1} parent=1 // pred_check_branch
      %114 = sbr.rel (0) target = $region29
    $region28: #{tpu_custom_call.1} parent=1 // pred_region
      %115 = dma.done [#allocation4], 128
    $region29: #{tpu_custom_call.1} parent=1 // pred_fallthru
      _
    %116 = vsyncpa [#allocation3], 1
    %117 = vsyncpa [#allocation6], 1
    %118 = vsyncpa [#allocation4], 1

</llo_original>
